<compile_context>
chip_gen: v7x
topology: tpu7x:2x2x1
jax: 0.10.0
libtpu: 0.0.40
codegen_flags: <defaults>
</compile_context>

<pallas_src>
import numpy as np
import jax
import jax.numpy as jnp
from jax.experimental import pallas as pl
from jax.experimental.pallas import tpu as pltpu

HID = 64          # self.hidden_size = 64 (hard-coded in the module)
ENC_H = 2 * HID   # encoder_outputs feature dim = 128
GATES = 8 * HID   # 4 gates x 2 directions = 512 fused gate lanes


def _attn_decoder_kernel(di_ref, ba_ref,                 # SMEM scalars
                         enc_ref, dec_ref, h0_ref, c0_ref,
                         wa_ref, wc_ref, wl_ref, b_ref,  # packed weights / biases
                         h_out_ref, c_out_ref):
    bsz, tsz, _ = enc_ref.shape

    enc = enc_ref[...]                                   # (B, T, 128)
    dec = dec_ref[...]                                   # (B, 128) == hidden[0].view(-1,128)
    wa = wa_ref[...]                                     # (2, 128): row0 = enc part, row1 = dec part

    # ---- attention scores (batched over B; VPU mul + lane reduce, no N=1 MXU pass) ----
    s_enc = jnp.sum(enc * wa[0:1, :].reshape(1, 1, ENC_H), axis=-1, keepdims=True)   # (B,T,1)
    s_dec = jnp.sum(dec * wa[1:2, :], axis=-1, keepdims=True) + ba_ref[0]            # (B,1)
    scores = s_enc + s_dec[:, None, :]                                               # (B,T,1)

    # softmax over the time axis (dim=1 in PyTorch)
    m = jnp.max(scores, axis=1, keepdims=True)
    e = jnp.exp(scores - m)
    attn_w = e / jnp.sum(e, axis=1, keepdims=True)                                   # (B,T,1)

    # bmm(enc^T, w).squeeze(2)  ==  sum_t w[b,t] * enc[b,t,:]
    attn_applied = jnp.sum(attn_w * enc, axis=1)                                     # (B,128)

    # ---- encoder_outputs[:, di, :] via batched masked sum over time (exact one-hot pick) ----
    t_idx = jax.lax.broadcasted_iota(jnp.int32, (1, tsz, 1), 1)                      # (1,T,1)
    enc_di = jnp.sum(jnp.where(t_idx == di_ref[0], enc, 0.0), axis=1)                # (B,128)

    # ---- attn_combine(cat(enc_di, attn_applied)) + ReLU (weight split on concat boundary) ----
    comb = (jnp.dot(enc_di, wc_ref[0:ENC_H, :], preferred_element_type=jnp.float32)
            + jnp.dot(attn_applied, wc_ref[ENC_H:, :], preferred_element_type=jnp.float32)
            + b_ref[0:1, GATES:])                                                    # (B,64)
    x = jnp.maximum(comb, 0.0)

    # ---- one-step bidirectional LSTM, both directions fused ----
    # gate lane layout: [i_d0|i_d1|f_d0|f_d1|g_d0|g_d1|o_d0|o_d1], 64 lanes each.
    h_prev = jnp.concatenate([h0_ref[0], h0_ref[1]], axis=-1)                        # (B,128)
    c_prev = jnp.concatenate([c0_ref[0], c0_ref[1]], axis=-1)                        # (B,128)
    gates = (jnp.dot(x, wl_ref[0:HID, :], preferred_element_type=jnp.float32)        # x-part
             + jnp.dot(h_prev, wl_ref[HID:, :], preferred_element_type=jnp.float32)  # h-part (block-diag)
             + b_ref[0:1, 0:GATES])                                                  # (B,512)

    i_g = jax.nn.sigmoid(gates[:, 0:ENC_H])
    f_g = jax.nn.sigmoid(gates[:, ENC_H:2 * ENC_H])
    g_g = jnp.tanh(gates[:, 2 * ENC_H:3 * ENC_H])
    o_g = jax.nn.sigmoid(gates[:, 3 * ENC_H:4 * ENC_H])
    c_new = f_g * c_prev + i_g * g_g                                                 # (B,128)
    h_new = o_g * jnp.tanh(c_new)                                                    # (B,128)

    # lane-dense (B,128) stores; direction split happens in the wrapper.
    h_out_ref[...] = h_new
    c_out_ref[...] = c_new


def attn_decoder_forward(packed, hidden, encoder_outputs, di):
    """Pallas implementation of AttnDecoderRNN.forward(hidden, encoder_outputs, di)."""
    h0, c0 = hidden                       # (2, B, 64) each, PyTorch LSTM state layout (untouched)
    b, t, h = encoder_outputs.shape
    assert h == ENC_H

    # hidden[0].view(-1, 128): contiguous reshape (free bitcast), reproduces the module's quirk.
    dec = h0.reshape(-1, ENC_H)           # (B, 128)
    di_arr = jnp.array([di], dtype=jnp.int32)

    smem = pl.BlockSpec(memory_space=pltpu.MemorySpace.SMEM)
    vmem = pl.BlockSpec(memory_space=pltpu.MemorySpace.VMEM)

    h_all, c_all = pl.pallas_call(
        _attn_decoder_kernel,
        in_specs=[
            smem,   # di (scalar)
            smem,   # attn bias (scalar)
            vmem,   # encoder_outputs            (B, T, 128)
            vmem,   # hidden[0].view(-1, 128)    (B, 128)
            vmem,   # h0 (PyTorch layout)        (2, B, 64)
            vmem,   # c0 (PyTorch layout)        (2, B, 64)
            vmem,   # attn weight, lane-dense    (2, 128)
            vmem,   # attn_combine W^T           (256, 64)
            vmem,   # fused LSTM weights         (192, 512)
            vmem,   # packed biases              (1, 576)
        ],
        out_specs=(vmem, vmem),
        out_shape=(jax.ShapeDtypeStruct((b, ENC_H), jnp.float32),
                   jax.ShapeDtypeStruct((b, ENC_H), jnp.float32)),
    )(di_arr, packed["ba"], encoder_outputs, dec, h0, c0,
      packed["wa"], packed["wc"], packed["w_lstm"], packed["biases"])

    output = h_all[:, None, :]                                    # (B, 1, 128), free reshape
    h_n = jnp.transpose(h_all.reshape(b, 2, HID), (1, 0, 2))      # back to PyTorch (2, B, 64)
    c_n = jnp.transpose(c_all.reshape(b, 2, HID), (1, 0, 2))
    return output, (h_n, c_n)


def init_params(key):
    """Deterministic synthetic params matching the module's shapes (PyTorch-style uniform init)."""
    ks = jax.random.split(key, 8)

    def u(k, shape, fan_in):
        bound = 1.0 / (fan_in ** 0.5)
        return jax.random.uniform(k, shape, jnp.float32, -bound, bound)

    waT = u(ks[0], (4 * HID, 1), 4 * HID)          # attn: Linear(256, 1), stored transposed
    ba = u(ks[1], (1, 1), 4 * HID)
    wcT = u(ks[2], (4 * HID, HID), 4 * HID)        # attn_combine: Linear(256, 64), transposed
    bc = u(ks[3], (1, HID), 4 * HID)
    wihT = u(ks[4], (2, HID, 4 * HID), HID)        # LSTM W_ih^T per direction, gate order i,f,g,o
    whhT = u(ks[5], (2, HID, 4 * HID), HID)
    b_ih = u(ks[6], (2, 4 * HID), HID)
    b_hh = u(ks[7], (2, 4 * HID), HID)
    return dict(waT=waT, ba=ba, wcT=wcT, bc=bc,
                wihT=wihT, whhT=whhT, bsum=b_ih + b_hh)


def pack_params(p):
    """Repack module parameters into the fused, lane-friendly layout the kernel expects."""
    # attn weight (256,1) -> (2,128) lane-dense rows [enc part; hidden part]; bias -> SMEM scalar.
    wa = p["waT"][:, 0].reshape(2, ENC_H)
    ba = p["ba"].reshape(1)

    # x-part of LSTM, both directions: columns regrouped gate-major / direction-minor.
    wx = p["wihT"].reshape(2, HID, 4, HID).transpose(1, 2, 0, 3).reshape(HID, GATES)    # (64, 512)

    # h-part: block-diagonal over directions so a single (B,128) @ (128,512) matmul covers both.
    whh4 = p["whhT"].reshape(2, HID, 4, HID)                     # [dir, in, gate, out]
    wh = jnp.zeros((2, HID, 4, 2, HID), jnp.float32)             # [dir_row, in, gate, dir_col, out]
    wh = wh.at[0, :, :, 0, :].set(whh4[0])
    wh = wh.at[1, :, :, 1, :].set(whh4[1])
    wh = wh.reshape(2 * HID, GATES)                              # (128, 512)

    w_lstm = jnp.concatenate([wx, wh], axis=0)                   # (192, 512)

    # biases: [fused LSTM bias (512, gate-major/dir-minor) | attn_combine bias (64)]
    b_lstm = p["bsum"].reshape(2, 4, HID).transpose(1, 0, 2).reshape(GATES)
    biases = jnp.concatenate([b_lstm, p["bc"][0]], axis=0)[None, :]                     # (1, 576)

    return dict(wa=wa, ba=ba, wc=p["wcT"], w_lstm=w_lstm, biases=biases)


def reference_forward(params, hidden, encoder_outputs, di):
    """Pure-JAX reference reproducing the PyTorch forward exactly."""
    h0, c0 = hidden
    b, t, h = encoder_outputs.shape
    dec_hidden = h0.reshape(-1, 2 * HID)                                # (B, 128)
    hidden_repeat = jnp.broadcast_to(dec_hidden[:, None, :], (b, t, 2 * HID))
    cat = jnp.concatenate([encoder_outputs, hidden_repeat], axis=2)     # (B, T, 256)
    aw = cat @ params["waT"] + params["ba"]                             # (B, T, 1)
    aw = jax.nn.softmax(aw, axis=1)
    attn_applied = jnp.einsum("bth,bto->bh", encoder_outputs, aw)       # (B, 128)
    output = jnp.concatenate([encoder_outputs[:, di, :], attn_applied], axis=1)
    output = jax.nn.relu(output @ params["wcT"] + params["bc"])         # (B, 64)
    hs, cs = [], []
    for d in range(2):
        gates = output @ params["wihT"][d] + h0[d] @ params["whhT"][d] + params["bsum"][d]
        i_g = jax.nn.sigmoid(gates[:, 0:HID])
        f_g = jax.nn.sigmoid(gates[:, HID:2 * HID])
        g_g = jnp.tanh(gates[:, 2 * HID:3 * HID])
        o_g = jax.nn.sigmoid(gates[:, 3 * HID:4 * HID])
        c_new = f_g * c0[d] + i_g * g_g
        h_new = o_g * jnp.tanh(c_new)
        hs.append(h_new)
        cs.append(c_new)
    out = jnp.concatenate(hs, axis=-1)[:, None, :]                      # (B, 1, 128)
    return out, (jnp.stack(hs, axis=0), jnp.stack(cs, axis=0))


if __name__ == "__main__":
    key = jax.random.PRNGKey(0)
    kp, k1, k2, k3 = jax.random.split(key, 4)
    params = init_params(kp)
    packed = pack_params(params)

    b, t, di = 2, 8, 3                       # small shapes: batch=2, seq(maxlen)=8, enc feat=128
    enc = jax.random.normal(k1, (b, t, ENC_H), jnp.float32)
    h0 = jax.random.normal(k2, (2, b, HID), jnp.float32)
    c0 = jax.random.normal(k3, (2, b, HID), jnp.float32)

    out, (h_new, c_new) = attn_decoder_forward(packed, (h0, c0), enc, di)
    jax.block_until_ready((out, h_new, c_new))

    ref_out, (ref_h, ref_c) = reference_forward(params, (h0, c0), enc, di)
    np.testing.assert_allclose(np.asarray(out), np.asarray(ref_out), rtol=1e-4, atol=1e-4)
    np.testing.assert_allclose(np.asarray(h_new), np.asarray(ref_h), rtol=1e-4, atol=1e-4)
    np.testing.assert_allclose(np.asarray(c_new), np.asarray(ref_c), rtol=1e-4, atol=1e-4)

    print("KERNEL_OK")
</pallas_src>

<mosaic_0001>
module attributes {stable_mosaic.version = 11 : i64} {
  func.func @_attn_decoder_kernel(%arg0: memref<1xi32, #tpu.memory_space<smem>>, %arg1: memref<1xf32, #tpu.memory_space<smem>>, %arg2: memref<2x8x128xf32, #tpu.memory_space<vmem>>, %arg3: memref<2x128xf32, #tpu.memory_space<vmem>>, %arg4: memref<2x2x64xf32, #tpu.memory_space<vmem>>, %arg5: memref<2x2x64xf32, #tpu.memory_space<vmem>>, %arg6: memref<2x128xf32, #tpu.memory_space<vmem>>, %arg7: memref<256x64xf32, #tpu.memory_space<vmem>>, %arg8: memref<192x512xf32, #tpu.memory_space<vmem>>, %arg9: memref<1x576xf32, #tpu.memory_space<vmem>>, %arg10: memref<2x128xf32, #tpu.memory_space<vmem>>, %arg11: memref<2x128xf32, #tpu.memory_space<vmem>>) attributes {dimension_semantics = [], scalar_prefetch = 0 : i64, scratch_operands = 0 : i64, tpu.core_type = #tpu.core_type<tc>} {
    %c0 = arith.constant 0 : index
    %c0_0 = arith.constant 0 : index
    %c0_1 = arith.constant 0 : index
    %0 = vector.load %arg2[%c0, %c0_0, %c0_1] : memref<2x8x128xf32, #tpu.memory_space<vmem>>, vector<2x8x128xf32>
    %c0_2 = arith.constant 0 : index
    %c0_3 = arith.constant 0 : index
    %1 = vector.load %arg3[%c0_2, %c0_3] : memref<2x128xf32, #tpu.memory_space<vmem>>, vector<2x128xf32>
    %c0_4 = arith.constant 0 : index
    %c0_5 = arith.constant 0 : index
    %2 = vector.load %arg6[%c0_4, %c0_5] : memref<2x128xf32, #tpu.memory_space<vmem>>, vector<2x128xf32>
    %3 = vector.extract_strided_slice %2 {offsets = [0, 0], sizes = [1, 128], strides = [1, 1]} : vector<2x128xf32> to vector<1x128xf32>
    %4 = vector.shape_cast %3 : vector<1x128xf32> to vector<1x1x128xf32>
    %5 = vector.broadcast %4 : vector<1x1x128xf32> to vector<2x8x128xf32>
    %6 = arith.mulf %0, %5 : vector<2x8x128xf32>
    %cst = arith.constant dense<0.000000e+00> : vector<2x8xf32>
    %7 = vector.multi_reduction <add>, %6, %cst [2] : vector<2x8x128xf32> to vector<2x8xf32>
    %8 = vector.shape_cast %7 : vector<2x8xf32> to vector<2x8x1xf32>
    %9 = vector.extract_strided_slice %2 {offsets = [1, 0], sizes = [1, 128], strides = [1, 1]} : vector<2x128xf32> to vector<1x128xf32>
    %10 = vector.broadcast %9 : vector<1x128xf32> to vector<2x128xf32>
    %11 = arith.mulf %1, %10 : vector<2x128xf32>
    %cst_6 = arith.constant dense<0.000000e+00> : vector<2xf32>
    %12 = vector.multi_reduction <add>, %11, %cst_6 [1] : vector<2x128xf32> to vector<2xf32>
    %13 = vector.shape_cast %12 : vector<2xf32> to vector<2x1xf32>
    %c0_7 = arith.constant 0 : index
    %14 = memref.load %arg1[%c0_7] : memref<1xf32, #tpu.memory_space<smem>>
    %15 = vector.broadcast %14 : f32 to vector<2x1xf32>
    %16 = arith.addf %13, %15 : vector<2x1xf32>
    %17 = vector.shape_cast %16 : vector<2x1xf32> to vector<2x1x1xf32>
    %18 = vector.broadcast %17 : vector<2x1x1xf32> to vector<2x8x1xf32>
    %19 = arith.addf %8, %18 : vector<2x8x1xf32>
    %cst_8 = arith.constant dense<0xFF800000> : vector<2x1xf32>
    %20 = vector.multi_reduction <maximumf>, %19, %cst_8 [1] : vector<2x8x1xf32> to vector<2x1xf32>
    %21 = vector.shape_cast %20 : vector<2x1xf32> to vector<2x1x1xf32>
    %22 = vector.broadcast %21 : vector<2x1x1xf32> to vector<2x8x1xf32>
    %23 = arith.subf %19, %22 : vector<2x8x1xf32>
    %24 = math.exp %23 : vector<2x8x1xf32>
    %cst_9 = arith.constant dense<0.000000e+00> : vector<2x1xf32>
    %25 = vector.multi_reduction <add>, %24, %cst_9 [1] : vector<2x8x1xf32> to vector<2x1xf32>
    %26 = vector.shape_cast %25 : vector<2x1xf32> to vector<2x1x1xf32>
    %27 = vector.broadcast %26 : vector<2x1x1xf32> to vector<2x8x1xf32>
    %28 = arith.divf %24, %27 : vector<2x8x1xf32>
    %29 = vector.broadcast %28 : vector<2x8x1xf32> to vector<2x8x128xf32>
    %30 = arith.mulf %29, %0 : vector<2x8x128xf32>
    %cst_10 = arith.constant dense<0.000000e+00> : vector<2x128xf32>
    %31 = vector.multi_reduction <add>, %30, %cst_10 [1] : vector<2x8x128xf32> to vector<2x128xf32>
    %32 = tpu.iota {dimensions = array<i32: 1>} : vector<1x8x1xi32>
    %c0_11 = arith.constant 0 : index
    %33 = memref.load %arg0[%c0_11] : memref<1xi32, #tpu.memory_space<smem>>
    %34 = vector.broadcast %33 : i32 to vector<1x8x1xi32>
    %35 = arith.cmpi eq, %32, %34 : vector<1x8x1xi32>
    %cst_12 = arith.constant 0.000000e+00 : f32
    %36 = vector.shape_cast %35 : vector<1x8x1xi1> to vector<1x8x1xi1>
    %37 = vector.broadcast %36 : vector<1x8x1xi1> to vector<2x8x128xi1>
    %38 = vector.broadcast %cst_12 : f32 to vector<2x8x128xf32>
    %39 = arith.select %37, %0, %38 : vector<2x8x128xi1>, vector<2x8x128xf32>
    %cst_13 = arith.constant dense<0.000000e+00> : vector<2x128xf32>
    %40 = vector.multi_reduction <add>, %39, %cst_13 [1] : vector<2x8x128xf32> to vector<2x128xf32>
    %c0_14 = arith.constant 0 : index
    %c0_15 = arith.constant 0 : index
    %41 = vector.load %arg7[%c0_14, %c0_15] : memref<256x64xf32, #tpu.memory_space<vmem>>, vector<128x64xf32>
    %cst_16 = arith.constant dense<0.000000e+00> : vector<2x64xf32>
    %42 = tpu.matmul %40, %41, %cst_16 {dimension_numbers = #tpu.dot_dimension_numbers<[1], [0], [0], [1], [0, 0, 1, 1], [], []>} : vector<2x128xf32>, vector<128x64xf32>, vector<2x64xf32> -> vector<2x64xf32>
    %c128 = arith.constant 128 : index
    %c0_17 = arith.constant 0 : index
    %43 = vector.load %arg7[%c128, %c0_17] : memref<256x64xf32, #tpu.memory_space<vmem>>, vector<128x64xf32>
    %cst_18 = arith.constant dense<0.000000e+00> : vector<2x64xf32>
    %44 = tpu.matmul %31, %43, %cst_18 {dimension_numbers = #tpu.dot_dimension_numbers<[1], [0], [0], [1], [0, 0, 1, 1], [], []>} : vector<2x128xf32>, vector<128x64xf32>, vector<2x64xf32> -> vector<2x64xf32>
    %45 = arith.addf %42, %44 : vector<2x64xf32>
    %c0_19 = arith.constant 0 : index
    %c512 = arith.constant 512 : index
    %46 = vector.load %arg9[%c0_19, %c512] : memref<1x576xf32, #tpu.memory_space<vmem>>, vector<1x64xf32>
    %47 = vector.broadcast %46 : vector<1x64xf32> to vector<2x64xf32>
    %48 = arith.addf %45, %47 : vector<2x64xf32>
    %cst_20 = arith.constant 0.000000e+00 : f32
    %49 = vector.broadcast %cst_20 : f32 to vector<2x64xf32>
    %50 = arith.maximumf %48, %49 : vector<2x64xf32>
    %c0_21 = arith.constant 0 : index
    %c0_22 = arith.constant 0 : index
    %c0_23 = arith.constant 0 : index
    %51 = vector.load %arg4[%c0_21, %c0_22, %c0_23] : memref<2x2x64xf32, #tpu.memory_space<vmem>>, vector<1x2x64xf32>
    %52 = vector.shape_cast %51 : vector<1x2x64xf32> to vector<2x64xf32>
    %c1 = arith.constant 1 : index
    %c0_24 = arith.constant 0 : index
    %c0_25 = arith.constant 0 : index
    %53 = vector.load %arg4[%c1, %c0_24, %c0_25] : memref<2x2x64xf32, #tpu.memory_space<vmem>>, vector<1x2x64xf32>
    %54 = vector.shape_cast %53 : vector<1x2x64xf32> to vector<2x64xf32>
    %55 = tpu.concatenate %52, %54 in 1 : vector<2x64xf32>, vector<2x64xf32> -> vector<2x128xf32>
    %c0_26 = arith.constant 0 : index
    %c0_27 = arith.constant 0 : index
    %c0_28 = arith.constant 0 : index
    %56 = vector.load %arg5[%c0_26, %c0_27, %c0_28] : memref<2x2x64xf32, #tpu.memory_space<vmem>>, vector<1x2x64xf32>
    %57 = vector.shape_cast %56 : vector<1x2x64xf32> to vector<2x64xf32>
    %c1_29 = arith.constant 1 : index
    %c0_30 = arith.constant 0 : index
    %c0_31 = arith.constant 0 : index
    %58 = vector.load %arg5[%c1_29, %c0_30, %c0_31] : memref<2x2x64xf32, #tpu.memory_space<vmem>>, vector<1x2x64xf32>
    %59 = vector.shape_cast %58 : vector<1x2x64xf32> to vector<2x64xf32>
    %60 = tpu.concatenate %57, %59 in 1 : vector<2x64xf32>, vector<2x64xf32> -> vector<2x128xf32>
    %c0_32 = arith.constant 0 : index
    %c0_33 = arith.constant 0 : index
    %61 = vector.load %arg8[%c0_32, %c0_33] : memref<192x512xf32, #tpu.memory_space<vmem>>, vector<64x512xf32>
    %cst_34 = arith.constant dense<0.000000e+00> : vector<2x512xf32>
    %62 = tpu.matmul %50, %61, %cst_34 {dimension_numbers = #tpu.dot_dimension_numbers<[1], [0], [0], [1], [0, 0, 1, 1], [], []>} : vector<2x64xf32>, vector<64x512xf32>, vector<2x512xf32> -> vector<2x512xf32>
    %c64 = arith.constant 64 : index
    %c0_35 = arith.constant 0 : index
    %63 = vector.load %arg8[%c64, %c0_35] : memref<192x512xf32, #tpu.memory_space<vmem>>, vector<128x512xf32>
    %cst_36 = arith.constant dense<0.000000e+00> : vector<2x512xf32>
    %64 = tpu.matmul %55, %63, %cst_36 {dimension_numbers = #tpu.dot_dimension_numbers<[1], [0], [0], [1], [0, 0, 1, 1], [], []>} : vector<2x128xf32>, vector<128x512xf32>, vector<2x512xf32> -> vector<2x512xf32>
    %65 = arith.addf %62, %64 : vector<2x512xf32>
    %c0_37 = arith.constant 0 : index
    %c0_38 = arith.constant 0 : index
    %66 = vector.load %arg9[%c0_37, %c0_38] : memref<1x576xf32, #tpu.memory_space<vmem>>, vector<1x512xf32>
    %67 = vector.broadcast %66 : vector<1x512xf32> to vector<2x512xf32>
    %68 = arith.addf %65, %67 : vector<2x512xf32>
    %69 = vector.extract_strided_slice %68 {offsets = [0, 0], sizes = [2, 128], strides = [1, 1]} : vector<2x512xf32> to vector<2x128xf32>
    %70 = arith.negf %69 : vector<2x128xf32>
    %71 = math.exp %70 : vector<2x128xf32>
    %cst_39 = arith.constant 1.000000e+00 : f32
    %72 = vector.broadcast %cst_39 : f32 to vector<2x128xf32>
    %73 = arith.addf %72, %71 : vector<2x128xf32>
    %74 = arith.divf %72, %73 : vector<2x128xf32>
    %75 = vector.extract_strided_slice %68 {offsets = [0, 128], sizes = [2, 128], strides = [1, 1]} : vector<2x512xf32> to vector<2x128xf32>
    %76 = arith.negf %75 : vector<2x128xf32>
    %77 = math.exp %76 : vector<2x128xf32>
    %cst_40 = arith.constant 1.000000e+00 : f32
    %78 = vector.broadcast %cst_40 : f32 to vector<2x128xf32>
    %79 = arith.addf %78, %77 : vector<2x128xf32>
    %80 = arith.divf %78, %79 : vector<2x128xf32>
    %81 = vector.extract_strided_slice %68 {offsets = [0, 256], sizes = [2, 128], strides = [1, 1]} : vector<2x512xf32> to vector<2x128xf32>
    %82 = math.tanh %81 : vector<2x128xf32>
    %83 = vector.extract_strided_slice %68 {offsets = [0, 384], sizes = [2, 128], strides = [1, 1]} : vector<2x512xf32> to vector<2x128xf32>
    %84 = arith.negf %83 : vector<2x128xf32>
    %85 = math.exp %84 : vector<2x128xf32>
    %cst_41 = arith.constant 1.000000e+00 : f32
    %86 = vector.broadcast %cst_41 : f32 to vector<2x128xf32>
    %87 = arith.addf %86, %85 : vector<2x128xf32>
    %88 = arith.divf %86, %87 : vector<2x128xf32>
    %89 = arith.mulf %80, %60 : vector<2x128xf32>
    %90 = arith.mulf %74, %82 : vector<2x128xf32>
    %91 = arith.addf %89, %90 : vector<2x128xf32>
    %92 = math.tanh %91 : vector<2x128xf32>
    %93 = arith.mulf %88, %92 : vector<2x128xf32>
    %c0_42 = arith.constant 0 : index
    %c0_43 = arith.constant 0 : index
    %94 = vector.load %arg10[%c0_42, %c0_43] : memref<2x128xf32, #tpu.memory_space<vmem>>, vector<2x128xf32>
    tpu.vector_store %arg10[%c0_42, %c0_43], %93 {strides = array<i32>} : memref<2x128xf32, #tpu.memory_space<vmem>>, vector<2x128xf32>,
    %c0_44 = arith.constant 0 : index
    %c0_45 = arith.constant 0 : index
    %95 = vector.load %arg11[%c0_44, %c0_45] : memref<2x128xf32, #tpu.memory_space<vmem>>, vector<2x128xf32>
    tpu.vector_store %arg11[%c0_44, %c0_45], %91 {strides = array<i32>} : memref<2x128xf32, #tpu.memory_space<vmem>>, vector<2x128xf32>,
    return
  }
}

</mosaic_0001>

<llo_original>
// kernel: tpu_custom_call.1
$region0: #{tpu_custom_call.1}
  #allocation0 [shape = 'u32[]', space=smem, size = 0x4, offset = 0x4, fixed_abs, tag = 'smem constant byte address 0x4 - core index']
  #allocation1 [shape = 'u32[144,128]{1,0:T(1,128)}', space=vmem, size = 0x12000, scoped, tag = 'internal scratch']
  #allocation2 [shape = 's32[1]{0:T(128)S(6)}', space=smem, size = 0x200, scoped, tag = 'scoped memory for tpu_custom_call.1']
  #allocation3 [shape = 'f32[1]{0:T(128)S(6)}', space=smem, size = 0x200, scoped, tag = 'scoped memory for tpu_custom_call.1']
  %s0 = inlined_call_operand.<no memory space> [shape: s32[1], index: 0, kind: input, shape index: {}]
  %s1 = inlined_call_operand.<no memory space> [shape: f32[1], index: 1, kind: input, shape index: {}]
  %s2 = inlined_call_operand.vmem [shape: f32[2,8,128], index: 2, kind: input, shape index: {}]
  %s3 = inlined_call_operand.vmem [shape: f32[2,128], index: 3, kind: input, shape index: {}]
  %s4 = inlined_call_operand.vmem [shape: f32[2,2,64], index: 4, kind: input, shape index: {}]
  %s5 = inlined_call_operand.vmem [shape: f32[2,2,64], index: 5, kind: input, shape index: {}]
  %s6 = inlined_call_operand.vmem [shape: f32[2,128], index: 6, kind: input, shape index: {}]
  %s7 = inlined_call_operand.vmem [shape: f32[256,64], index: 7, kind: input, shape index: {}]
  %s8 = inlined_call_operand.hbm [shape: f32[192,512], index: 8, kind: input, shape index: {}]
  %s9 = inlined_call_operand.vmem [shape: f32[1,576], index: 9, kind: input, shape index: {}]
  %s10 = inlined_call_operand.hbm [shape: f32[2,128], index: 10, kind: output, shape index: {0}]
  %s11 = inlined_call_operand.hbm [shape: f32[2,128], index: 11, kind: output, shape index: {1}]
  %12 = xla_tuple %s10, %s11
  %s13 = sld [smem:[#allocation0]]
  $region62: #{tpu_custom_call.1} parent=0
    _
  %s15 = ssub.s32 1, %s13
  %s16 = scalar_select 0, %s15, %s13
  %17 = sst [smem:[#allocation2]] %s0
  %18 = sst [smem:[#allocation3]] %s1
  $region1: #{tpu_custom_call.1} parent=0
    #allocation4 [shape = 'u8[393216]{0}', space=vmem, size = 0x60000, scoped, tag = 'input window, operand 8, single buffered']
    #allocation5 [shape = 's32[1]{0}', space=sflag, size = 0x4, scoped, tag = 'scoped memory for tpu_custom_call.1']
    #allocation6 [shape = 's32[1]{0}', space=sflag, size = 0x4, scoped, tag = 'scoped memory for tpu_custom_call.1']
    #allocation7 [shape = 'u8[1024]{0}', space=vmem, size = 0x400, scoped, tag = 'output window, operand 0, single buffered']
    #allocation8 [shape = 'u8[1024]{0}', space=vmem, size = 0x400, scoped, tag = 'output window, operand 1, single buffered']
    #allocation9 [shape = 's32[1]{0}', space=sflag, size = 0x4, scoped, tag = 'scoped memory for tpu_custom_call.1']
    %19 = vsyncpa [#allocation5], 0
    %20 = vsyncpa [#allocation6], 0
    %21 = vsyncpa [#allocation9], 0
    // Predicated region
    $region2: #{tpu_custom_call.1} parent=1 // pred_check
      _
    $region3: #{tpu_custom_call.1} parent=1 // pred_check_branch
      %23 = sbr.rel (0) target = $region5
    $region4: #{tpu_custom_call.1} parent=1 // pred_region
      _
    $region5: #{tpu_custom_call.1} parent=1 // pred_fallthru
      _
    // Predicated region
    $region6: #{tpu_custom_call.1} parent=1 // pred_check
      _
    $region7: #{tpu_custom_call.1} parent=1 // pred_check_branch
      %25 = sbr.rel (0) target = $region9
    $region8: #{tpu_custom_call.1} parent=1 // pred_region
      _
    $region9: #{tpu_custom_call.1} parent=1 // pred_fallthru
      _
    // Predicated region
    $region10: #{tpu_custom_call.1} parent=1 // pred_check
      _
    $region11: #{tpu_custom_call.1} parent=1 // pred_check_branch
      %27 = sbr.rel (0) target = $region13
    $region12: #{tpu_custom_call.1} parent=1 // pred_region
      _
    $region13: #{tpu_custom_call.1} parent=1 // pred_fallthru
      _
    // Predicated region
    $region14: #{tpu_custom_call.1} parent=1 // pred_check
      _
    $region15: #{tpu_custom_call.1} parent=1 // pred_check_branch
      %29 = sbr.rel (0) target = $region17
    $region16: #{tpu_custom_call.1} parent=1 // pred_region
      _
    $region17: #{tpu_custom_call.1} parent=1 // pred_fallthru
      _
    // Predicated region
    $region18: #{tpu_custom_call.1} parent=1 // pred_check
      _
    $region19: #{tpu_custom_call.1} parent=1 // pred_check_branch
      %31 = sbr.rel (0) target = $region21
    $region20: #{tpu_custom_call.1} parent=1 // pred_region
      _
    $region21: #{tpu_custom_call.1} parent=1 // pred_fallthru
      _
    // Predicated region
    $region22: #{tpu_custom_call.1} parent=1 // pred_check
      _
    $region23: #{tpu_custom_call.1} parent=1 // pred_check_branch
      %33 = sbr.rel (0) target = $region25
    $region24: #{tpu_custom_call.1} parent=1 // pred_region
      _
    $region25: #{tpu_custom_call.1} parent=1 // pred_fallthru
      _
    // Predicated region
    $region26: #{tpu_custom_call.1} parent=1 // pred_check
      _
    $region27: #{tpu_custom_call.1} parent=1 // pred_check_branch
      %35 = sbr.rel (0) target = $region29
    $region28: #{tpu_custom_call.1} parent=1 // pred_region
      _
    $region29: #{tpu_custom_call.1} parent=1 // pred_fallthru
      _
    // Predicated region
    $region30: #{tpu_custom_call.1} parent=1 // pred_check
      _
    $region31: #{tpu_custom_call.1} parent=1 // pred_check_branch
      %37 = sbr.rel (0) target = $region33
    $region32: #{tpu_custom_call.1} parent=1 // pred_region
      _
    $region33: #{tpu_custom_call.1} parent=1 // pred_fallthru
      _
    // Predicated region
    $region34: #{tpu_custom_call.1} parent=1 // pred_check
      _
    $region35: #{tpu_custom_call.1} parent=1 // pred_check_branch
      %39 = sbr.rel (0) target = $region37
    $region36: #{tpu_custom_call.1} parent=1 // pred_region
      %s41 = ssub.s32 12288, 12288
      %42 = vsyncadd [#allocation5], %s41
      %s43 = sshll.u32 [#allocation4], 4
      %s44 = int_to_ptr.vmem [resolvable:$true] %s43
      %49 = dma.hbm_to_vmem [thread:$0]  %s8, 12288, %s44, [#allocation5], 512, 512, 32
    $region37: #{tpu_custom_call.1} parent=1 // pred_fallthru
      _
    // Predicated region
    $region38: #{tpu_custom_call.1} parent=1 // pred_check
      _
    $region39: #{tpu_custom_call.1} parent=1 // pred_check_branch
      %51 = sbr.rel (0) target = $region41
    $region40: #{tpu_custom_call.1} parent=1 // pred_region
      _
    $region41: #{tpu_custom_call.1} parent=1 // pred_fallthru
      _
    // Predicated region
    $region42: #{tpu_custom_call.1} parent=1 // pred_check
      _
    $region43: #{tpu_custom_call.1} parent=1 // pred_check_branch
      %53 = sbr.rel (0) target = $region45
    $region44: #{tpu_custom_call.1} parent=1 // pred_region
      %54 = dma.done [#allocation5], 12288
    $region45: #{tpu_custom_call.1} parent=1 // pred_fallthru
      _
    %v55 = vld [vmem:[%s2] sm:$0xff]
    %v56 = vld [vmem:[%s2 + $0x8] sm:$0xff]
    %v57 = vld [vmem:[%s3] sm:$0x3]
    %v58 = vld [vmem:[%s6] sm:$0x3]
    %v59 = vlaneseq
    %v60 = vshrl.u32 %v59, 7
    %v61 = vsub.s32 0, %v60
    %v62 = vrot.slane %v58, %v61
    %v63 = vmul.f32 %v55, %v62
    %v64 = vmul.f32 %v56, %v62
    %65 = vadd.xlane.f32.xlu0 %v63
    %v66 = vpop.xlane.xlu0 %65
    %67 = vadd.xlane.f32.xlu0 %v64
    %v68 = vpop.xlane.xlu0 %67
    %v69 = vlaneseq
    %v70 = vshrl.u32 %v69, 7
    %v71 = vsub.s32 1, %v70
    %v72 = vrot.slane %v58, %v71
    %v73 = vmul.f32 %v57, %v72
    %vm74 = vcmask 1041408
    %v75 = vsel %vm74, %v73, 0.0
    %76 = vadd.xlane.f32.xlu0 %v75
    %v77 = vpop.xlane.xlu0 %76
    %s78 = sld [smem:[#allocation3]]
    %v79 = vstv %s78
    %v80 = vadd.f32 %v77, %v79
    %v82 = vlaneseq
    %v83 = vshrl.u32 %v82, 7
    %v84 = vsub.s32 0, %v83
    %v85 = vrot.slane %v80, %v84
    %v86 = vlaneseq
    %v87 = vshrl.u32 %v86, 7
    %v88 = vsub.s32 1, %v87
    %v89 = vrot.slane %v80, %v88
    %v92 = vadd.f32 %v66, %v85
    %v93 = vadd.f32 %v68, %v89
    %v94 = vrot.slane %v92, 4
    %v95 = vmax.f32 %v92, %v94
    %v96 = vrot.slane %v95, 2
    %v97 = vmax.f32 %v95, %v96
    %v98 = vrot.slane %v97, 1
    %v99 = vmax.f32 %v97, %v98
    %v100 = vrot.slane %v93, 4
    %v101 = vmax.f32 %v93, %v100
    %v102 = vrot.slane %v101, 2
    %v103 = vmax.f32 %v101, %v102
    %v104 = vrot.slane %v103, 1
    %v105 = vmax.f32 %v103, %v104
    %v106 = vsub.f32 %v92, %v99
    %v107 = vsub.f32 %v93, %v105
    %v108 = vmul.f32 %v106, 1.442695
    %v109 = vpow.pop %v108
    %v110 = vmul.f32 %v107, 1.442695
    %v111 = vpow.pop %v110
    %v112 = vrot.slane %v109, 4
    %v113 = vadd.f32 %v109, %v112
    %v114 = vrot.slane %v113, 2
    %v115 = vadd.f32 %v113, %v114
    %v116 = vrot.slane %v115, 1
    %v117 = vadd.f32 %v115, %v116
    %v118 = vrot.slane %v111, 4
    %v119 = vadd.f32 %v111, %v118
    %v120 = vrot.slane %v119, 2
    %v121 = vadd.f32 %v119, %v120
    %v122 = vrot.slane %v121, 1
    %v123 = vadd.f32 %v121, %v122
    %v124 = vrcp.pop %v117
    %v125 = vmul.f32 %v109, %v124
    %v126 = vrcp.pop %v123
    %v127 = vmul.f32 %v111, %v126
    %v128 = vmul.f32 %v125, %v55
    %v129 = vmul.f32 %v127, %v56
    %v130 = vrot.slane %v128, 4
    %v131 = vadd.f32 %v128, %v130
    %v132 = vrot.slane %v131, 2
    %v133 = vadd.f32 %v131, %v132
    %v134 = vrot.slane %v133, 1
    %v135 = vadd.f32 %v133, %v134
    %v136 = vrot.slane %v129, 4
    %v137 = vadd.f32 %v129, %v136
    %v138 = vrot.slane %v137, 2
    %v139 = vadd.f32 %v137, %v138
    %v140 = vrot.slane %v139, 1
    %v141 = vadd.f32 %v139, %v140
    %v142 = vlaneseq
    %v143 = vshrl.u32 %v142, 7
    %s144 = sld [smem:[#allocation2]]
    %v145 = vstv %s144
    %vm146 = vcmp.eq.s32.totalorder %v143, %v145
    %v147 = vsel %vm146, 1, 0
    %vm148 = vcmp.eq.s32.totalorder %v147, 1
    %v149 = vsel %vm148, %v55, 0.0
    %v150 = vsel %vm148, %v56, 0.0
    %v151 = vrot.slane %v149, 4
    %v152 = vadd.f32 %v149, %v151
    %v153 = vrot.slane %v152, 2
    %v154 = vadd.f32 %v152, %v153
    %v155 = vrot.slane %v154, 1
    %v156 = vadd.f32 %v154, %v155
    %v157 = vrot.slane %v150, 4
    %v158 = vadd.f32 %v150, %v157
    %v159 = vrot.slane %v158, 2
    %v160 = vadd.f32 %v158, %v159
    %v161 = vrot.slane %v160, 1
    %v162 = vadd.f32 %v160, %v161
    %v163 = vld [vmem:[%s7] sm:$0xff]
    %v164 = vld [vmem:[%s7 + $0x8] sm:$0xff]
    %v165 = vld [vmem:[%s7 + $0x10] sm:$0xff]
    %v166 = vld [vmem:[%s7 + $0x18] sm:$0xff]
    %v167 = vld [vmem:[%s7 + $0x20] sm:$0xff]
    %v168 = vld [vmem:[%s7 + $0x28] sm:$0xff]
    %v169 = vld [vmem:[%s7 + $0x30] sm:$0xff]
    %v170 = vld [vmem:[%s7 + $0x38] sm:$0xff]
    %v171 = vld [vmem:[%s7 + $0x40] sm:$0xff]
    %v172 = vld [vmem:[%s7 + $0x48] sm:$0xff]
    %v173 = vld [vmem:[%s7 + $0x50] sm:$0xff]
    %v174 = vld [vmem:[%s7 + $0x58] sm:$0xff]
    %v175 = vld [vmem:[%s7 + $0x60] sm:$0xff]
    %v176 = vld [vmem:[%s7 + $0x68] sm:$0xff]
    %v177 = vld [vmem:[%s7 + $0x70] sm:$0xff]
    %v178 = vld [vmem:[%s7 + $0x78] sm:$0xff]
    %v179 = vld [vmem:[%s7 + $0x80] sm:$0xff]
    %v180 = vld [vmem:[%s7 + $0x88] sm:$0xff]
    %v181 = vld [vmem:[%s7 + $0x90] sm:$0xff]
    %v182 = vld [vmem:[%s7 + $0x98] sm:$0xff]
    %v183 = vld [vmem:[%s7 + $0xa0] sm:$0xff]
    %v184 = vld [vmem:[%s7 + $0xa8] sm:$0xff]
    %v185 = vld [vmem:[%s7 + $0xb0] sm:$0xff]
    %v186 = vld [vmem:[%s7 + $0xb8] sm:$0xff]
    %v187 = vld [vmem:[%s7 + $0xc0] sm:$0xff]
    %v188 = vld [vmem:[%s7 + $0xc8] sm:$0xff]
    %v189 = vld [vmem:[%s7 + $0xd0] sm:$0xff]
    %v190 = vld [vmem:[%s7 + $0xd8] sm:$0xff]
    %v191 = vld [vmem:[%s7 + $0xe0] sm:$0xff]
    %v192 = vld [vmem:[%s7 + $0xe8] sm:$0xff]
    %v193 = vld [vmem:[%s7 + $0xf0] sm:$0xff]
    %v194 = vld [vmem:[%s7 + $0xf8] sm:$0xff]
    %vm197 = vcmask 1041409
    %v198 = vsel %vm197, %v141, %v135
    %200 = vmatprep.subr.mxu0 0.0
    %201 = vmatpush1.msra.mxu0 %v179
    %202 = vmatprep.subr.mxu0 0.0
    %203 = vmatpush1.msra.mxu0 %v180
    %204 = vmatprep.subr.mxu0 0.0
    %205 = vmatpush1.msra.mxu0 %v181
    %206 = vmatprep.subr.mxu0 0.0
    %207 = vmatpush1.msra.mxu0 %v182
    %208 = vmatprep.subr.mxu0 0.0
    %209 = vmatpush1.msra.mxu0 %v183
    %210 = vmatprep.subr.mxu0 0.0
    %211 = vmatpush1.msra.mxu0 %v184
    %212 = vmatprep.subr.mxu0 0.0
    %213 = vmatpush1.msra.mxu0 %v185
    %214 = vmatprep.subr.mxu0 0.0
    %215 = vmatpush1.msra.mxu0 %v186
    %216 = vmatprep.subr.mxu0 0.0
    %217 = vmatpush1.msra.mxu0 %v187
    %218 = vmatprep.subr.mxu0 0.0
    %219 = vmatpush1.msra.mxu0 %v188
    %220 = vmatprep.subr.mxu0 0.0
    %221 = vmatpush1.msra.mxu0 %v189
    %222 = vmatprep.subr.mxu0 0.0
    %223 = vmatpush1.msra.mxu0 %v190
    %224 = vmatprep.subr.mxu0 0.0
    %225 = vmatpush1.msra.mxu0 %v191
    %226 = vmatprep.subr.mxu0 0.0
    %227 = vmatpush1.msra.mxu0 %v192
    %228 = vmatprep.subr.mxu0 0.0
    %229 = vmatpush1.msra.mxu0 %v193
    %230 = vmatprep.subr.mxu0 0.0
    %231 = vmatpush1.msra.mxu0 %v194
    %232 = vmatprep.subr.mxu0 0.0
    %233 = vmatpush1.msra.mxu0 0.0
    %234 = vmatprep.subr.mxu0 0.0
    %235 = vmatpush1.msra.mxu0 0.0
    %236 = vmatprep.subr.mxu0 0.0
    %237 = vmatpush1.msra.mxu0 0.0
    %238 = vmatprep.subr.mxu0 0.0
    %239 = vmatpush1.msra.mxu0 0.0
    %240 = vmatprep.subr.mxu0 0.0
    %241 = vmatpush1.msra.mxu0 0.0
    %242 = vmatprep.subr.mxu0 0.0
    %243 = vmatpush1.msra.mxu0 0.0
    %244 = vmatprep.subr.mxu0 0.0
    %245 = vmatpush1.msra.mxu0 0.0
    %246 = vmatprep.subr.mxu0 0.0
    %247 = vmatpush1.msra.mxu0 0.0
    %248 = vmatprep.subr.mxu0 0.0
    %249 = vmatpush1.msra.mxu0 0.0
    %250 = vmatprep.subr.mxu0 0.0
    %251 = vmatpush1.msra.mxu0 0.0
    %252 = vmatprep.subr.mxu0 0.0
    %253 = vmatpush1.msra.mxu0 0.0
    %254 = vmatprep.subr.mxu0 0.0
    %255 = vmatpush1.msra.mxu0 0.0
    %256 = vmatprep.subr.mxu0 0.0
    %257 = vmatpush1.msra.mxu0 0.0
    %258 = vmatprep.subr.mxu0 0.0
    %259 = vmatpush1.msra.mxu0 0.0
    %260 = vmatprep.subr.mxu0 0.0
    %261 = vmatpush1.msra.mxu0 0.0
    %262 = vmatprep.subr.mxu0 0.0
    %263 = vmatpush1.msra.mxu0 0.0
    %264 = vmatprep.mubr.f32.mxu0 0.0
    %265 = vmatmul.mubr.f32.gmra.mrb[0].mxu0 %v198
    %v266 = vpop.f32.mrb[0].mxu0
    %v267 = vadd.f32 0.0, %v266
    %v268 = vpop.f32.mrb[0].mxu0
    %269 = vdwg.mxu0
    %v272 = vsel %vm197, %v162, %v156
    %274 = vmatprep.subr.mxu0 0.0
    %275 = vmatpush1.msra.mxu0 %v163
    %276 = vmatprep.subr.mxu0 0.0
    %277 = vmatpush1.msra.mxu0 %v164
    %278 = vmatprep.subr.mxu0 0.0
    %279 = vmatpush1.msra.mxu0 %v165
    %280 = vmatprep.subr.mxu0 0.0
    %281 = vmatpush1.msra.mxu0 %v166
    %282 = vmatprep.subr.mxu0 0.0
    %283 = vmatpush1.msra.mxu0 %v167
    %284 = vmatprep.subr.mxu0 0.0
    %285 = vmatpush1.msra.mxu0 %v168
    %286 = vmatprep.subr.mxu0 0.0
    %287 = vmatpush1.msra.mxu0 %v169
    %288 = vmatprep.subr.mxu0 0.0
    %289 = vmatpush1.msra.mxu0 %v170
    %290 = vmatprep.subr.mxu0 0.0
    %291 = vmatpush1.msra.mxu0 %v171
    %292 = vmatprep.subr.mxu0 0.0
    %293 = vmatpush1.msra.mxu0 %v172
    %294 = vmatprep.subr.mxu0 0.0
    %295 = vmatpush1.msra.mxu0 %v173
    %296 = vmatprep.subr.mxu0 0.0
    %297 = vmatpush1.msra.mxu0 %v174
    %298 = vmatprep.subr.mxu0 0.0
    %299 = vmatpush1.msra.mxu0 %v175
    %300 = vmatprep.subr.mxu0 0.0
    %301 = vmatpush1.msra.mxu0 %v176
    %302 = vmatprep.subr.mxu0 0.0
    %303 = vmatpush1.msra.mxu0 %v177
    %304 = vmatprep.subr.mxu0 0.0
    %305 = vmatpush1.msra.mxu0 %v178
    %306 = vmatprep.subr.mxu0 0.0
    %307 = vmatpush1.msra.mxu0 0.0
    %308 = vmatprep.subr.mxu0 0.0
    %309 = vmatpush1.msra.mxu0 0.0
    %310 = vmatprep.subr.mxu0 0.0
    %311 = vmatpush1.msra.mxu0 0.0
    %312 = vmatprep.subr.mxu0 0.0
    %313 = vmatpush1.msra.mxu0 0.0
    %314 = vmatprep.subr.mxu0 0.0
    %315 = vmatpush1.msra.mxu0 0.0
    %316 = vmatprep.subr.mxu0 0.0
    %317 = vmatpush1.msra.mxu0 0.0
    %318 = vmatprep.subr.mxu0 0.0
    %319 = vmatpush1.msra.mxu0 0.0
    %320 = vmatprep.subr.mxu0 0.0
    %321 = vmatpush1.msra.mxu0 0.0
    %322 = vmatprep.subr.mxu0 0.0
    %323 = vmatpush1.msra.mxu0 0.0
    %324 = vmatprep.subr.mxu0 0.0
    %325 = vmatpush1.msra.mxu0 0.0
    %326 = vmatprep.subr.mxu0 0.0
    %327 = vmatpush1.msra.mxu0 0.0
    %328 = vmatprep.subr.mxu0 0.0
    %329 = vmatpush1.msra.mxu0 0.0
    %330 = vmatprep.subr.mxu0 0.0
    %331 = vmatpush1.msra.mxu0 0.0
    %332 = vmatprep.subr.mxu0 0.0
    %333 = vmatpush1.msra.mxu0 0.0
    %334 = vmatprep.subr.mxu0 0.0
    %335 = vmatpush1.msra.mxu0 0.0
    %336 = vmatprep.subr.mxu0 0.0
    %337 = vmatpush1.msra.mxu0 0.0
    %338 = vmatprep.mubr.f32.mxu0 0.0
    %339 = vmatmul.mubr.f32.gmra.mrb[0].mxu0 %v272
    %v340 = vpop.f32.mrb[0].mxu0
    %v341 = vadd.f32 %v267, %v340
    %v342 = vpop.f32.mrb[0].mxu0
    %343 = vdwg.mxu0
    %v344 = vld [vmem:[%s9 + $0x4] sm:$0x1]
    %v346 = vlaneseq
    %v347 = vshrl.u32 %v346, 7
    %v348 = vsub.s32 0, %v347
    %v349 = vrot.slane %v344, %v348
    %v351 = vadd.f32 %v341, %v349
    %v352 = vmax.f32 %v351, 0.0
    %v353 = vld [vmem:[%s4] sm:$0x3]
    %s354 = scalar_lea.vmem %s4, 2
    %v355 = vld [vmem:[%s354] sm:$0x3]
    %357 = vrot.lane.b32.xlu0 %v355, 64
    %v358 = vpop.permute.xlu0 %357
    %vm360 = vcmask 523264
    %v361 = vsel %vm360, %v353, %v358
    %v362 = vld [vmem:[%s5] sm:$0x3]
    %s363 = scalar_lea.vmem %s5, 2
    %v364 = vld [vmem:[%s363] sm:$0x3]
    %366 = vrot.lane.b32.xlu0 %v364, 64
    %v367 = vpop.permute.xlu0 %366
    %v369 = vsel %vm360, %v362, %v367
    %v370 = vld [vmem:[#allocation4] sm:$0xff]
    %v371 = vld [vmem:[#allocation4 + $0x8] sm:$0xff]
    %v372 = vld [vmem:[#allocation4 + $0x10] sm:$0xff]
    %v373 = vld [vmem:[#allocation4 + $0x18] sm:$0xff]
    %v374 = vld [vmem:[#allocation4 + $0x20] sm:$0xff]
    %v375 = vld [vmem:[#allocation4 + $0x28] sm:$0xff]
    %v376 = vld [vmem:[#allocation4 + $0x30] sm:$0xff]
    %v377 = vld [vmem:[#allocation4 + $0x38] sm:$0xff]
    %v378 = vld [vmem:[#allocation4 + $0x40] sm:$0xff]
    %v379 = vld [vmem:[#allocation4 + $0x48] sm:$0xff]
    %v380 = vld [vmem:[#allocation4 + $0x50] sm:$0xff]
    %v381 = vld [vmem:[#allocation4 + $0x58] sm:$0xff]
    %v382 = vld [vmem:[#allocation4 + $0x60] sm:$0xff]
    %v383 = vld [vmem:[#allocation4 + $0x68] sm:$0xff]
    %v384 = vld [vmem:[#allocation4 + $0x70] sm:$0xff]
    %v385 = vld [vmem:[#allocation4 + $0x78] sm:$0xff]
    %v386 = vld [vmem:[#allocation4 + $0x80] sm:$0xff]
    %v387 = vld [vmem:[#allocation4 + $0x88] sm:$0xff]
    %v388 = vld [vmem:[#allocation4 + $0x90] sm:$0xff]
    %v389 = vld [vmem:[#allocation4 + $0x98] sm:$0xff]
    %v390 = vld [vmem:[#allocation4 + $0xa0] sm:$0xff]
    %v391 = vld [vmem:[#allocation4 + $0xa8] sm:$0xff]
    %v392 = vld [vmem:[#allocation4 + $0xb0] sm:$0xff]
    %v393 = vld [vmem:[#allocation4 + $0xb8] sm:$0xff]
    %v394 = vld [vmem:[#allocation4 + $0xc0] sm:$0xff]
    %v395 = vld [vmem:[#allocation4 + $0xc8] sm:$0xff]
    %v396 = vld [vmem:[#allocation4 + $0xd0] sm:$0xff]
    %v397 = vld [vmem:[#allocation4 + $0xd8] sm:$0xff]
    %v398 = vld [vmem:[#allocation4 + $0xe0] sm:$0xff]
    %v399 = vld [vmem:[#allocation4 + $0xe8] sm:$0xff]
    %v400 = vld [vmem:[#allocation4 + $0xf0] sm:$0xff]
    %v401 = vld [vmem:[#allocation4 + $0xf8] sm:$0xff]
    %v402 = vld [vmem:[#allocation4 + $0x100] sm:$0xff]
    %v403 = vld [vmem:[#allocation4 + $0x108] sm:$0xff]
    %v404 = vld [vmem:[#allocation4 + $0x110] sm:$0xff]
    %v405 = vld [vmem:[#allocation4 + $0x118] sm:$0xff]
    %v406 = vld [vmem:[#allocation4 + $0x120] sm:$0xff]
    %v407 = vld [vmem:[#allocation4 + $0x128] sm:$0xff]
    %v408 = vld [vmem:[#allocation4 + $0x130] sm:$0xff]
    %v409 = vld [vmem:[#allocation4 + $0x138] sm:$0xff]
    %v410 = vld [vmem:[#allocation4 + $0x140] sm:$0xff]
    %v411 = vld [vmem:[#allocation4 + $0x148] sm:$0xff]
    %v412 = vld [vmem:[#allocation4 + $0x150] sm:$0xff]
    %v413 = vld [vmem:[#allocation4 + $0x158] sm:$0xff]
    %v414 = vld [vmem:[#allocation4 + $0x160] sm:$0xff]
    %v415 = vld [vmem:[#allocation4 + $0x168] sm:$0xff]
    %v416 = vld [vmem:[#allocation4 + $0x170] sm:$0xff]
    %v417 = vld [vmem:[#allocation4 + $0x178] sm:$0xff]
    %v418 = vld [vmem:[#allocation4 + $0x180] sm:$0xff]
    %v419 = vld [vmem:[#allocation4 + $0x188] sm:$0xff]
    %v420 = vld [vmem:[#allocation4 + $0x190] sm:$0xff]
    %v421 = vld [vmem:[#allocation4 + $0x198] sm:$0xff]
    %v422 = vld [vmem:[#allocation4 + $0x1a0] sm:$0xff]
    %v423 = vld [vmem:[#allocation4 + $0x1a8] sm:$0xff]
    %v424 = vld [vmem:[#allocation4 + $0x1b0] sm:$0xff]
    %v425 = vld [vmem:[#allocation4 + $0x1b8] sm:$0xff]
    %v426 = vld [vmem:[#allocation4 + $0x1c0] sm:$0xff]
    %v427 = vld [vmem:[#allocation4 + $0x1c8] sm:$0xff]
    %v428 = vld [vmem:[#allocation4 + $0x1d0] sm:$0xff]
    %v429 = vld [vmem:[#allocation4 + $0x1d8] sm:$0xff]
    %v430 = vld [vmem:[#allocation4 + $0x1e0] sm:$0xff]
    %v431 = vld [vmem:[#allocation4 + $0x1e8] sm:$0xff]
    %v432 = vld [vmem:[#allocation4 + $0x1f0] sm:$0xff]
    %v433 = vld [vmem:[#allocation4 + $0x1f8] sm:$0xff]
    %v434 = vld [vmem:[#allocation4 + $0x200] sm:$0xff]
    %v435 = vld [vmem:[#allocation4 + $0x208] sm:$0xff]
    %v436 = vld [vmem:[#allocation4 + $0x210] sm:$0xff]
    %v437 = vld [vmem:[#allocation4 + $0x218] sm:$0xff]
    %v438 = vld [vmem:[#allocation4 + $0x220] sm:$0xff]
    %v439 = vld [vmem:[#allocation4 + $0x228] sm:$0xff]
    %v440 = vld [vmem:[#allocation4 + $0x230] sm:$0xff]
    %v441 = vld [vmem:[#allocation4 + $0x238] sm:$0xff]
    %v442 = vld [vmem:[#allocation4 + $0x240] sm:$0xff]
    %v443 = vld [vmem:[#allocation4 + $0x248] sm:$0xff]
    %v444 = vld [vmem:[#allocation4 + $0x250] sm:$0xff]
    %v445 = vld [vmem:[#allocation4 + $0x258] sm:$0xff]
    %v446 = vld [vmem:[#allocation4 + $0x260] sm:$0xff]
    %v447 = vld [vmem:[#allocation4 + $0x268] sm:$0xff]
    %v448 = vld [vmem:[#allocation4 + $0x270] sm:$0xff]
    %v449 = vld [vmem:[#allocation4 + $0x278] sm:$0xff]
    %v450 = vld [vmem:[#allocation4 + $0x280] sm:$0xff]
    %v451 = vld [vmem:[#allocation4 + $0x288] sm:$0xff]
    %v452 = vld [vmem:[#allocation4 + $0x290] sm:$0xff]
    %v453 = vld [vmem:[#allocation4 + $0x298] sm:$0xff]
    %v454 = vld [vmem:[#allocation4 + $0x2a0] sm:$0xff]
    %v455 = vld [vmem:[#allocation4 + $0x2a8] sm:$0xff]
    %v456 = vld [vmem:[#allocation4 + $0x2b0] sm:$0xff]
    %v457 = vld [vmem:[#allocation4 + $0x2b8] sm:$0xff]
    %v458 = vld [vmem:[#allocation4 + $0x2c0] sm:$0xff]
    %v459 = vld [vmem:[#allocation4 + $0x2c8] sm:$0xff]
    %v460 = vld [vmem:[#allocation4 + $0x2d0] sm:$0xff]
    %v461 = vld [vmem:[#allocation4 + $0x2d8] sm:$0xff]
    %v462 = vld [vmem:[#allocation4 + $0x2e0] sm:$0xff]
    %v463 = vld [vmem:[#allocation4 + $0x2e8] sm:$0xff]
    %v464 = vld [vmem:[#allocation4 + $0x2f0] sm:$0xff]
    %v465 = vld [vmem:[#allocation4 + $0x2f8] sm:$0xff]
    %466 = vmatprep.subr.mxu0 %v403
    %467 = vmatpush1.msra.mxu0 %v402
    %468 = vmatprep.subr.mxu0 %v407
    %469 = vmatpush1.msra.mxu0 %v406
    %470 = vmatprep.subr.mxu0 %v411
    %471 = vmatpush1.msra.mxu0 %v410
    %472 = vmatprep.subr.mxu0 %v415
    %473 = vmatpush1.msra.mxu0 %v414
    %474 = vmatprep.subr.mxu0 %v419
    %475 = vmatpush1.msra.mxu0 %v418
    %476 = vmatprep.subr.mxu0 %v423
    %477 = vmatpush1.msra.mxu0 %v422
    %478 = vmatprep.subr.mxu0 %v427
    %479 = vmatpush1.msra.mxu0 %v426
    %480 = vmatprep.subr.mxu0 %v431
    %481 = vmatpush1.msra.mxu0 %v430
    %482 = vmatprep.subr.mxu0 %v435
    %483 = vmatpush1.msra.mxu0 %v434
    %484 = vmatprep.subr.mxu0 %v439
    %485 = vmatpush1.msra.mxu0 %v438
    %486 = vmatprep.subr.mxu0 %v443
    %487 = vmatpush1.msra.mxu0 %v442
    %488 = vmatprep.subr.mxu0 %v447
    %489 = vmatpush1.msra.mxu0 %v446
    %490 = vmatprep.subr.mxu0 %v451
    %491 = vmatpush1.msra.mxu0 %v450
    %492 = vmatprep.subr.mxu0 %v455
    %493 = vmatpush1.msra.mxu0 %v454
    %494 = vmatprep.subr.mxu0 %v459
    %495 = vmatpush1.msra.mxu0 %v458
    %496 = vmatprep.subr.mxu0 %v463
    %497 = vmatpush1.msra.mxu0 %v462
    %498 = vmatprep.subr.mxu0 0.0
    %499 = vmatpush1.msra.mxu0 0.0
    %500 = vmatprep.subr.mxu0 0.0
    %501 = vmatpush1.msra.mxu0 0.0
    %502 = vmatprep.subr.mxu0 0.0
    %503 = vmatpush1.msra.mxu0 0.0
    %504 = vmatprep.subr.mxu0 0.0
    %505 = vmatpush1.msra.mxu0 0.0
    %506 = vmatprep.subr.mxu0 0.0
    %507 = vmatpush1.msra.mxu0 0.0
    %508 = vmatprep.subr.mxu0 0.0
    %509 = vmatpush1.msra.mxu0 0.0
    %510 = vmatprep.subr.mxu0 0.0
    %511 = vmatpush1.msra.mxu0 0.0
    %512 = vmatprep.subr.mxu0 0.0
    %513 = vmatpush1.msra.mxu0 0.0
    %514 = vmatprep.subr.mxu0 0.0
    %515 = vmatpush1.msra.mxu0 0.0
    %516 = vmatprep.subr.mxu0 0.0
    %517 = vmatpush1.msra.mxu0 0.0
    %518 = vmatprep.subr.mxu0 0.0
    %519 = vmatpush1.msra.mxu0 0.0
    %520 = vmatprep.subr.mxu0 0.0
    %521 = vmatpush1.msra.mxu0 0.0
    %522 = vmatprep.subr.mxu0 0.0
    %523 = vmatpush1.msra.mxu0 0.0
    %524 = vmatprep.subr.mxu0 0.0
    %525 = vmatpush1.msra.mxu0 0.0
    %526 = vmatprep.subr.mxu0 0.0
    %527 = vmatpush1.msra.mxu0 0.0
    %528 = vmatprep.subr.mxu0 0.0
    %529 = vmatpush1.msra.mxu0 0.0
    %530 = vmatprep.mubr.f32.mxu0 0.0
    %531 = vmatmul.mubr.f32.gmra.mrb[0].mxu0 %v361
    %v532 = vpop.f32.mrb[0].mxu0
    %v533 = vadd.f32 0.0, %v532
    %v534 = vpop.f32.mrb[0].mxu0
    %v535 = vadd.f32 0.0, %v534
    %536 = vdwg.mxu0
    %537 = vmatprep.subr.mxu0 %v405
    %538 = vmatpush1.msra.mxu0 %v404
    %539 = vmatprep.subr.mxu0 %v409
    %540 = vmatpush1.msra.mxu0 %v408
    %541 = vmatprep.subr.mxu0 %v413
    %542 = vmatpush1.msra.mxu0 %v412
    %543 = vmatprep.subr.mxu0 %v417
    %544 = vmatpush1.msra.mxu0 %v416
    %545 = vmatprep.subr.mxu0 %v421
    %546 = vmatpush1.msra.mxu0 %v420
    %547 = vmatprep.subr.mxu0 %v425
    %548 = vmatpush1.msra.mxu0 %v424
    %549 = vmatprep.subr.mxu0 %v429
    %550 = vmatpush1.msra.mxu0 %v428
    %551 = vmatprep.subr.mxu0 %v433
    %552 = vmatpush1.msra.mxu0 %v432
    %553 = vmatprep.subr.mxu0 %v437
    %554 = vmatpush1.msra.mxu0 %v436
    %555 = vmatprep.subr.mxu0 %v441
    %556 = vmatpush1.msra.mxu0 %v440
    %557 = vmatprep.subr.mxu0 %v445
    %558 = vmatpush1.msra.mxu0 %v444
    %559 = vmatprep.subr.mxu0 %v449
    %560 = vmatpush1.msra.mxu0 %v448
    %561 = vmatprep.subr.mxu0 %v453
    %562 = vmatpush1.msra.mxu0 %v452
    %563 = vmatprep.subr.mxu0 %v457
    %564 = vmatpush1.msra.mxu0 %v456
    %565 = vmatprep.subr.mxu0 %v461
    %566 = vmatpush1.msra.mxu0 %v460
    %567 = vmatprep.subr.mxu0 %v465
    %568 = vmatpush1.msra.mxu0 %v464
    %569 = vmatprep.subr.mxu0 0.0
    %570 = vmatpush1.msra.mxu0 0.0
    %571 = vmatprep.subr.mxu0 0.0
    %572 = vmatpush1.msra.mxu0 0.0
    %573 = vmatprep.subr.mxu0 0.0
    %574 = vmatpush1.msra.mxu0 0.0
    %575 = vmatprep.subr.mxu0 0.0
    %576 = vmatpush1.msra.mxu0 0.0
    %577 = vmatprep.subr.mxu0 0.0
    %578 = vmatpush1.msra.mxu0 0.0
    %579 = vmatprep.subr.mxu0 0.0
    %580 = vmatpush1.msra.mxu0 0.0
    %581 = vmatprep.subr.mxu0 0.0
    %582 = vmatpush1.msra.mxu0 0.0
    %583 = vmatprep.subr.mxu0 0.0
    %584 = vmatpush1.msra.mxu0 0.0
    %585 = vmatprep.subr.mxu0 0.0
    %586 = vmatpush1.msra.mxu0 0.0
    %587 = vmatprep.subr.mxu0 0.0
    %588 = vmatpush1.msra.mxu0 0.0
    %589 = vmatprep.subr.mxu0 0.0
    %590 = vmatpush1.msra.mxu0 0.0
    %591 = vmatprep.subr.mxu0 0.0
    %592 = vmatpush1.msra.mxu0 0.0
    %593 = vmatprep.subr.mxu0 0.0
    %594 = vmatpush1.msra.mxu0 0.0
    %595 = vmatprep.subr.mxu0 0.0
    %596 = vmatpush1.msra.mxu0 0.0
    %597 = vmatprep.subr.mxu0 0.0
    %598 = vmatpush1.msra.mxu0 0.0
    %599 = vmatprep.subr.mxu0 0.0
    %600 = vmatpush1.msra.mxu0 0.0
    %601 = vmatprep.mubr.f32.mxu0 0.0
    %602 = vmatmul.mubr.f32.gmra.mrb[0].mxu0 %v361
    %v603 = vpop.f32.mrb[0].mxu0
    %v604 = vadd.f32 0.0, %v603
    %v605 = vpop.f32.mrb[0].mxu0
    %v606 = vadd.f32 0.0, %v605
    %607 = vdwg.mxu0
    %v609 = vsel %vm360, %v352, 0
    %611 = vmatprep.subr.mxu0 %v371
    %612 = vmatpush1.msra.mxu0 %v370
    %613 = vmatprep.subr.mxu0 %v375
    %614 = vmatpush1.msra.mxu0 %v374
    %615 = vmatprep.subr.mxu0 %v379
    %616 = vmatpush1.msra.mxu0 %v378
    %617 = vmatprep.subr.mxu0 %v383
    %618 = vmatpush1.msra.mxu0 %v382
    %619 = vmatprep.subr.mxu0 %v387
    %620 = vmatpush1.msra.mxu0 %v386
    %621 = vmatprep.subr.mxu0 %v391
    %622 = vmatpush1.msra.mxu0 %v390
    %623 = vmatprep.subr.mxu0 %v395
    %624 = vmatpush1.msra.mxu0 %v394
    %625 = vmatprep.subr.mxu0 %v399
    %626 = vmatpush1.msra.mxu0 %v398
    %627 = vmatprep.subr.mxu0 0.0
    %628 = vmatpush1.msra.mxu0 0.0
    %629 = vmatprep.subr.mxu0 0.0
    %630 = vmatpush1.msra.mxu0 0.0
    %631 = vmatprep.subr.mxu0 0.0
    %632 = vmatpush1.msra.mxu0 0.0
    %633 = vmatprep.subr.mxu0 0.0
    %634 = vmatpush1.msra.mxu0 0.0
    %635 = vmatprep.subr.mxu0 0.0
    %636 = vmatpush1.msra.mxu0 0.0
    %637 = vmatprep.subr.mxu0 0.0
    %638 = vmatpush1.msra.mxu0 0.0
    %639 = vmatprep.subr.mxu0 0.0
    %640 = vmatpush1.msra.mxu0 0.0
    %641 = vmatprep.subr.mxu0 0.0
    %642 = vmatpush1.msra.mxu0 0.0
    %643 = vmatprep.subr.mxu0 0.0
    %644 = vmatpush1.msra.mxu0 0.0
    %645 = vmatprep.subr.mxu0 0.0
    %646 = vmatpush1.msra.mxu0 0.0
    %647 = vmatprep.subr.mxu0 0.0
    %648 = vmatpush1.msra.mxu0 0.0
    %649 = vmatprep.subr.mxu0 0.0
    %650 = vmatpush1.msra.mxu0 0.0
    %651 = vmatprep.subr.mxu0 0.0
    %652 = vmatpush1.msra.mxu0 0.0
    %653 = vmatprep.subr.mxu0 0.0
    %654 = vmatpush1.msra.mxu0 0.0
    %655 = vmatprep.subr.mxu0 0.0
    %656 = vmatpush1.msra.mxu0 0.0
    %657 = vmatprep.subr.mxu0 0.0
    %658 = vmatpush1.msra.mxu0 0.0
    %659 = vmatprep.subr.mxu0 0.0
    %660 = vmatpush1.msra.mxu0 0.0
    %661 = vmatprep.subr.mxu0 0.0
    %662 = vmatpush1.msra.mxu0 0.0
    %663 = vmatprep.subr.mxu0 0.0
    %664 = vmatpush1.msra.mxu0 0.0
    %665 = vmatprep.subr.mxu0 0.0
    %666 = vmatpush1.msra.mxu0 0.0
    %667 = vmatprep.subr.mxu0 0.0
    %668 = vmatpush1.msra.mxu0 0.0
    %669 = vmatprep.subr.mxu0 0.0
    %670 = vmatpush1.msra.mxu0 0.0
    %671 = vmatprep.subr.mxu0 0.0
    %672 = vmatpush1.msra.mxu0 0.0
    %673 = vmatprep.subr.mxu0 0.0
    %674 = vmatpush1.msra.mxu0 0.0
    %675 = vmatprep.mubr.f32.mxu0 0.0
    %676 = vmatmul.mubr.f32.gmra.mrb[0].mxu0 %v609
    %v677 = vpop.f32.mrb[0].mxu0
    %v678 = vadd.f32 %v533, %v677
    %v679 = vpop.f32.mrb[0].mxu0
    %v680 = vadd.f32 %v535, %v679
    %681 = vdwg.mxu0
    %682 = vmatprep.subr.mxu0 %v373
    %683 = vmatpush1.msra.mxu0 %v372
    %684 = vmatprep.subr.mxu0 %v377
    %685 = vmatpush1.msra.mxu0 %v376
    %686 = vmatprep.subr.mxu0 %v381
    %687 = vmatpush1.msra.mxu0 %v380
    %688 = vmatprep.subr.mxu0 %v385
    %689 = vmatpush1.msra.mxu0 %v384
    %690 = vmatprep.subr.mxu0 %v389
    %691 = vmatpush1.msra.mxu0 %v388
    %692 = vmatprep.subr.mxu0 %v393
    %693 = vmatpush1.msra.mxu0 %v392
    %694 = vmatprep.subr.mxu0 %v397
    %695 = vmatpush1.msra.mxu0 %v396
    %696 = vmatprep.subr.mxu0 %v401
    %697 = vmatpush1.msra.mxu0 %v400
    %698 = vmatprep.subr.mxu0 0.0
    %699 = vmatpush1.msra.mxu0 0.0
    %700 = vmatprep.subr.mxu0 0.0
    %701 = vmatpush1.msra.mxu0 0.0
    %702 = vmatprep.subr.mxu0 0.0
    %703 = vmatpush1.msra.mxu0 0.0
    %704 = vmatprep.subr.mxu0 0.0
    %705 = vmatpush1.msra.mxu0 0.0
    %706 = vmatprep.subr.mxu0 0.0
    %707 = vmatpush1.msra.mxu0 0.0
    %708 = vmatprep.subr.mxu0 0.0
    %709 = vmatpush1.msra.mxu0 0.0
    %710 = vmatprep.subr.mxu0 0.0
    %711 = vmatpush1.msra.mxu0 0.0
    %712 = vmatprep.subr.mxu0 0.0
    %713 = vmatpush1.msra.mxu0 0.0
    %714 = vmatprep.subr.mxu0 0.0
    %715 = vmatpush1.msra.mxu0 0.0
    %716 = vmatprep.subr.mxu0 0.0
    %717 = vmatpush1.msra.mxu0 0.0
    %718 = vmatprep.subr.mxu0 0.0
    %719 = vmatpush1.msra.mxu0 0.0
    %720 = vmatprep.subr.mxu0 0.0
    %721 = vmatpush1.msra.mxu0 0.0
    %722 = vmatprep.subr.mxu0 0.0
    %723 = vmatpush1.msra.mxu0 0.0
    %724 = vmatprep.subr.mxu0 0.0
    %725 = vmatpush1.msra.mxu0 0.0
    %726 = vmatprep.subr.mxu0 0.0
    %727 = vmatpush1.msra.mxu0 0.0
    %728 = vmatprep.subr.mxu0 0.0
    %729 = vmatpush1.msra.mxu0 0.0
    %730 = vmatprep.subr.mxu0 0.0
    %731 = vmatpush1.msra.mxu0 0.0
    %732 = vmatprep.subr.mxu0 0.0
    %733 = vmatpush1.msra.mxu0 0.0
    %734 = vmatprep.subr.mxu0 0.0
    %735 = vmatpush1.msra.mxu0 0.0
    %736 = vmatprep.subr.mxu0 0.0
    %737 = vmatpush1.msra.mxu0 0.0
    %738 = vmatprep.subr.mxu0 0.0
    %739 = vmatpush1.msra.mxu0 0.0
    %740 = vmatprep.subr.mxu0 0.0
    %741 = vmatpush1.msra.mxu0 0.0
    %742 = vmatprep.subr.mxu0 0.0
    %743 = vmatpush1.msra.mxu0 0.0
    %744 = vmatprep.subr.mxu0 0.0
    %745 = vmatpush1.msra.mxu0 0.0
    %746 = vmatprep.mubr.f32.mxu0 0.0
    %747 = vmatmul.mubr.f32.gmra.mrb[0].mxu0 %v609
    %v748 = vpop.f32.mrb[0].mxu0
    %v749 = vadd.f32 %v604, %v748
    %v750 = vpop.f32.mrb[0].mxu0
    %v751 = vadd.f32 %v606, %v750
    %752 = vdwg.mxu0
    %v753 = vld [vmem:[%s9] sm:$0xf]
    %v755 = vlaneseq
    %v756 = vshrl.u32 %v755, 7
    %v757 = vsub.s32 0, %v756
    %v758 = vrot.slane %v753, %v757
    %v759 = vlaneseq
    %v760 = vshrl.u32 %v759, 7
    %v761 = vsub.s32 1, %v760
    %v762 = vrot.slane %v753, %v761
    %v763 = vlaneseq
    %v764 = vshrl.u32 %v763, 7
    %v765 = vsub.s32 2, %v764
    %v766 = vrot.slane %v753, %v765
    %v767 = vlaneseq
    %v768 = vshrl.u32 %v767, 7
    %v769 = vsub.s32 3, %v768
    %v770 = vrot.slane %v753, %v769
    %v775 = vadd.f32 %v678, %v758
    %v776 = vadd.f32 %v680, %v762
    %v777 = vadd.f32 %v749, %v766
    %v778 = vadd.f32 %v751, %v770
    %v779 = vxor.u32 %v775, 2147483648
    %v780 = vmul.f32 %v779, 1.442695
    %v781 = vpow.pop %v780
    %v782 = vadd.f32 %v781, 1.0
    %v783 = vrcp.pop %v782
    %v784 = vmul.f32 1.0, %v783
    %v785 = vxor.u32 %v776, 2147483648
    %v786 = vmul.f32 %v785, 1.442695
    %v787 = vpow.pop %v786
    %v788 = vadd.f32 %v787, 1.0
    %v789 = vrcp.pop %v788
    %v790 = vmul.f32 1.0, %v789
    %v791 = vtanh.pop %v777
    %v792 = vxor.u32 %v778, 2147483648
    %v793 = vmul.f32 %v792, 1.442695
    %v794 = vpow.pop %v793
    %v795 = vadd.f32 %v794, 1.0
    %v796 = vrcp.pop %v795
    %v797 = vmul.f32 1.0, %v796
    %v798 = vmul.f32 %v790, %v369
    %v799 = vmul.f32 %v784, %v791
    %v800 = vadd.f32 %v798, %v799
    %v801 = vtanh.pop %v800
    %v802 = vmul.f32 %v797, %v801
    %803 = vst [vmem:[#allocation7] sm:$0x3] %v802
    %804 = vst [vmem:[#allocation8] sm:$0x3] %v800
    // Predicated region
    $region46: #{tpu_custom_call.1} parent=1 // pred_check
      _
    $region47: #{tpu_custom_call.1} parent=1 // pred_check_branch
      %806 = sbr.rel (0) target = $region49
    $region48: #{tpu_custom_call.1} parent=1 // pred_region
      %s808 = ssub.s32 32, 32
      %809 = vsyncadd [#allocation6], %s808
      %s811 = sshll.u32 [#allocation7], 4
      %s812 = int_to_ptr.vmem [resolvable:$true] %s811
      %814 = dma.vmem_to_hbm [thread:$0]  %s812, 32, %s10, [#allocation6]
    $region49: #{tpu_custom_call.1} parent=1 // pred_fallthru
      _
    // Predicated region
    $region50: #{tpu_custom_call.1} parent=1 // pred_check
      _
    $region51: #{tpu_custom_call.1} parent=1 // pred_check_branch
      %816 = sbr.rel (0) target = $region53
    $region52: #{tpu_custom_call.1} parent=1 // pred_region
      %s818 = ssub.s32 32, 32
      %819 = vsyncadd [#allocation9], %s818
      %s821 = sshll.u32 [#allocation8], 4
      %s822 = int_to_ptr.vmem [resolvable:$true] %s821
      %824 = dma.vmem_to_hbm [thread:$0]  %s822, 32, %s11, [#allocation9]
    $region53: #{tpu_custom_call.1} parent=1 // pred_fallthru
      _
    // Predicated region
    $region54: #{tpu_custom_call.1} parent=1 // pred_check
      _
    $region55: #{tpu_custom_call.1} parent=1 // pred_check_branch
      %826 = sbr.rel (0) target = $region57
    $region56: #{tpu_custom_call.1} parent=1 // pred_region
      %827 = dma.done [#allocation6], 32
    $region57: #{tpu_custom_call.1} parent=1 // pred_fallthru
      _
    // Predicated region
    $region58: #{tpu_custom_call.1} parent=1 // pred_check
      _
    $region59: #{tpu_custom_call.1} parent=1 // pred_check_branch
      %829 = sbr.rel (0) target = $region61
    $region60: #{tpu_custom_call.1} parent=1 // pred_region
      %830 = dma.done [#allocation9], 32
    $region61: #{tpu_custom_call.1} parent=1 // pred_fallthru
      _
    %831 = vsyncpa [#allocation5], 1
    %832 = vsyncpa [#allocation6], 1
    %833 = vsyncpa [#allocation9], 1

</llo_original>
